<compile_context>
chip_gen: v7x
topology: tpu7x:2x2x1
jax: 0.10.0
libtpu: 0.0.40
codegen_flags: <defaults>
</compile_context>

<pallas_src>
import functools
import math

import jax
import jax.numpy as jnp
from jax.experimental import pallas as pl
from jax.experimental.pallas import tpu as pltpu


# --------------------------------------------------------------------------- #
# Kernels                                                                      #
# --------------------------------------------------------------------------- #
def _gem_rowsum_kernel(p_ref, x_ref, o_ref, *, eps, inv_hw):
    """Standard path (K >= 128): clamp -> ^p -> mean over last axis -> ^(1/p)."""
    p, inv_p = p_ref[0], p_ref[1]                        # [p, 1/p] from SMEM
    x = jnp.maximum(x_ref[...].astype(jnp.float32), eps)  # f32 math even for bf16 input
    xp = jnp.exp(p * jnp.log(x))                          # x ** p   (EUP)
    s = jnp.sum(xp, axis=-1, keepdims=True) * inv_hw      # per-row mean, (tm, 1)
    o_ref[...] = jnp.exp(jnp.log(s) * inv_p)              # (.) ** (1/p)


def _gem_packed_kernel(p_ref, x_ref, ones_ref, o_ref, *, eps, inv_hw):
    """Small-K path: g original rows packed per kernel row; segmented mean on the MXU."""
    p, inv_p = p_ref[0], p_ref[1]
    x = jnp.maximum(x_ref[...].astype(jnp.float32), eps)
    xp = jnp.exp(p * jnp.log(x))
    # (tm, g*K) @ (g*K, g) block-diag ones -> (tm, g): per-original-row sums,
    # lane-dense output block.  HIGHEST precision keeps full f32 accuracy.
    s = jnp.dot(xp, ones_ref[...],
                precision=jax.lax.Precision.HIGHEST,
                preferred_element_type=jnp.float32) * inv_hw
    o_ref[...] = jnp.exp(jnp.log(s) * inv_p)


# --------------------------------------------------------------------------- #
# Wrapper                                                                      #
# --------------------------------------------------------------------------- #
def _round_up(x, m):
    return ((x + m - 1) // m) * m


def _pick_group(M, K):
    """Rows packed per kernel row: >1 only when K < 128 (lane-sparse) and it tiles cleanly."""
    if K >= 128:
        return 1
    g = 128 // math.gcd(K, 128)        # smallest g with (g*K) % 128 == 0
    return g if (M % g == 0) else 1


def gem_pool(x_nchw, p, eps=1e-6, *,
             vmem_tile_bytes=8 * 1024 * 1024,    # per-input-tile budget (double-buffered by Pallas)
             single_block_max_bytes=1 << 20,     # <= 1 MiB: one grid step is cheapest
             min_grid_steps=8):                  # bigger inputs: >= 8 steps (overlap + 2 TCs on v7x)
    """GeM pooling: (N, C, H, W) -> (N, C).  Matches torch GeM.forward."""
    N, C, H, W = x_nchw.shape
    M, K = N * C, H * W

    # Pack g rows per kernel row when K < 128 so every vreg lane / EUP slot is useful.
    g = _pick_group(M, K)
    Mr, Kr = M // g, K * g
    x2 = x_nchw.reshape(Mr, Kr)                  # free row-major reshape: no transpose, no pad

    p_scalar = jnp.asarray(p, jnp.float32).reshape(())
    p_vec = jnp.stack([p_scalar, 1.0 / p_scalar])   # [p, 1/p] ride the SMEM scalar path

    # Row tiling: whole problem in one block only if tiny; otherwise size the tile
    # from the byte budget but force >= min_grid_steps steps for DMA/compute overlap.
    row_bytes = Kr * x2.dtype.itemsize
    total_bytes = Mr * row_bytes
    if total_bytes <= single_block_max_bytes or Mr <= 8:
        tm = Mr
    else:
        tm_budget = max(8, (vmem_tile_bytes // row_bytes) // 8 * 8)
        tm_steps = max(8, _round_up(pl.cdiv(Mr, min_grid_steps), 8))
        tm = min(tm_budget, tm_steps)
    grid = (pl.cdiv(Mr, tm),)                    # ragged last block; stores beyond Mr are masked

    kernel_args = [p_vec, x2]
    in_specs = [
        pl.BlockSpec(memory_space=pltpu.MemorySpace.SMEM),   # [p, 1/p] scalars
        pl.BlockSpec((tm, Kr), lambda i: (i, 0)),            # activation rows
    ]
    if g == 1:
        kernel = functools.partial(_gem_rowsum_kernel, eps=float(eps), inv_hw=1.0 / float(K))
        out_cols = 1
    else:
        # Block-diagonal ones (g*K, g): column c selects original row c inside a packed row.
        ones_bd = jnp.repeat(jnp.eye(g, dtype=jnp.float32), K, axis=0)
        kernel = functools.partial(_gem_packed_kernel, eps=float(eps), inv_hw=1.0 / float(K))
        kernel_args.append(ones_bd)
        in_specs.append(pl.BlockSpec((Kr, g), lambda i: (0, 0)))   # constant block: fetched once
        out_cols = g

    out = pl.pallas_call(
        kernel,
        out_shape=jax.ShapeDtypeStruct((Mr, out_cols), jnp.float32),
        grid=grid,
        in_specs=in_specs,
        out_specs=pl.BlockSpec((tm, out_cols), lambda i: (i, 0)),
        compiler_params=pltpu.CompilerParams(
            dimension_semantics=("parallel",),
            vmem_limit_bytes=32 * 1024 * 1024,   # 2 x 8 MiB tile + output fits on v5e/v6e/v7x
        ),
    )(*kernel_args)
    return out.reshape(N, C)                     # nn.Flatten(1) of (N, C, 1, 1)


# --------------------------------------------------------------------------- #
# Pure-JAX reference (for correctness check)                                   #
# --------------------------------------------------------------------------- #
def gem_reference(x, p, eps=1e-6):
    xc = jnp.maximum(x, eps)
    pooled = jnp.mean(xc ** p, axis=(-2, -1))
    return pooled ** (1.0 / p)


# --------------------------------------------------------------------------- #
if __name__ == "__main__":
    key = jax.random.PRNGKey(0)
    eps = 1e-6
    p = jnp.float32(3.0)           # nn.Parameter(torch.ones(1) * 3)

    # Case 1: module-sized input (2, 4, 16, 16) -> single-block row-sum path.
    x1 = jax.random.normal(key, (2, 4, 16, 16), jnp.float32)
    y1 = jax.block_until_ready(jax.jit(lambda a, b: gem_pool(a, b, eps))(x1, p))
    assert y1.shape == (2, 4) and y1.dtype == jnp.float32
    assert jnp.allclose(y1, gem_reference(x1, p, eps), rtol=1e-4, atol=1e-5)

    # Case 2: common 7x7 backbone output -> packed small-K (MXU segmented-reduce) path.
    x2 = jax.random.normal(jax.random.fold_in(key, 1), (2, 256, 7, 7), jnp.float32)
    y2 = jax.block_until_ready(jax.jit(lambda a, b: gem_pool(a, b, eps))(x2, p))
    assert y2.shape == (2, 256)
    assert jnp.allclose(y2, gem_reference(x2, p, eps), rtol=1e-4, atol=1e-5)

    # Case 3: force the tiled path (multi-step grid with a ragged last block, no padding).
    x3 = jax.random.normal(jax.random.fold_in(key, 2), (3, 17, 16, 16), jnp.float32)
    y3 = jax.block_until_ready(
        jax.jit(lambda a, b: gem_pool(a, b, eps, single_block_max_bytes=0))(x3, p))
    assert y3.shape == (3, 17)
    assert jnp.allclose(y3, gem_reference(x3, p, eps), rtol=1e-4, atol=1e-5)

    # Case 4: bf16 activations stay bf16 over HBM; math/accumulation in f32 inside the kernel.
    x4 = jax.random.normal(jax.random.fold_in(key, 3), (2, 8, 16, 16), jnp.float32)
    y4 = jax.block_until_ready(
        jax.jit(lambda a, b: gem_pool(a, b, eps))(x4.astype(jnp.bfloat16), p))
    ref4 = gem_reference(x4.astype(jnp.bfloat16).astype(jnp.float32), p, eps)
    assert y4.shape == (2, 8)
    assert jnp.allclose(y4, ref4, rtol=1e-3, atol=1e-4)

    print("KERNEL_OK")
</pallas_src>

<mosaic_0001>
module attributes {stable_mosaic.version = 11 : i64} {
  func.func @_gem_rowsum_kernel(%arg0: i32, %arg1: memref<2xf32, #tpu.memory_space<smem>>, %arg2: memref<8x256xf32, #tpu.memory_space<vmem>>, %arg3: memref<8x1xf32, #tpu.memory_space<vmem>>) attributes {dimension_semantics = [#tpu.dimension_semantics<parallel>], iteration_bounds = array<i64: 1>, scalar_prefetch = 0 : i64, scratch_operands = 0 : i64, tpu.core_type = #tpu.core_type<tc>, window_params = [{transform_indices = @transform_0, window_bounds = array<i64: 2>}, {transform_indices = @transform_1, window_bounds = array<i64: 8, 256>}, {transform_indices = @transform_2, window_bounds = array<i64: 8, 1>}]} {
    %c0 = arith.constant 0 : index
    %0 = memref.load %arg1[%c0] : memref<2xf32, #tpu.memory_space<smem>>
    %c1 = arith.constant 1 : index
    %1 = memref.load %arg1[%c1] : memref<2xf32, #tpu.memory_space<smem>>
    %c0_0 = arith.constant 0 : index
    %c0_1 = arith.constant 0 : index
    %2 = vector.load %arg2[%c0_0, %c0_1] : memref<8x256xf32, #tpu.memory_space<vmem>>, vector<8x256xf32>
    %cst = arith.constant 9.99999997E-7 : f32
    %3 = vector.broadcast %cst : f32 to vector<8x256xf32>
    %4 = arith.maximumf %2, %3 : vector<8x256xf32>
    %5 = math.log %4 : vector<8x256xf32>
    %6 = vector.broadcast %0 : f32 to vector<8x256xf32>
    %7 = arith.mulf %6, %5 : vector<8x256xf32>
    %8 = math.exp %7 : vector<8x256xf32>
    %cst_2 = arith.constant dense<0.000000e+00> : vector<8xf32>
    %9 = vector.multi_reduction <add>, %8, %cst_2 [1] : vector<8x256xf32> to vector<8xf32>
    %10 = vector.shape_cast %9 : vector<8xf32> to vector<8x1xf32>
    %cst_3 = arith.constant 3.906250e-03 : f32
    %11 = vector.broadcast %cst_3 : f32 to vector<8x1xf32>
    %12 = arith.mulf %10, %11 : vector<8x1xf32>
    %13 = math.log %12 : vector<8x1xf32>
    %14 = vector.broadcast %1 : f32 to vector<8x1xf32>
    %15 = arith.mulf %13, %14 : vector<8x1xf32>
    %16 = math.exp %15 : vector<8x1xf32>
    %c0_4 = arith.constant 0 : index
    %c0_5 = arith.constant 0 : index
    %17 = vector.load %arg3[%c0_4, %c0_5] : memref<8x1xf32, #tpu.memory_space<vmem>>, vector<8x1xf32>
    tpu.vector_store %arg3[%c0_4, %c0_5], %16 {strides = array<i32>} : memref<8x1xf32, #tpu.memory_space<vmem>>, vector<8x1xf32>,
    return
  }
  func.func @transform_0(%arg0: i32) -> i32 {
    %c0_i32 = arith.constant 0 : i32
    %c0_i32_0 = arith.constant 0 : i32
    return %c0_i32 : i32
  }
  func.func @transform_1(%arg0: i32) -> (i32, i32) {
    %c0_i32 = arith.constant 0 : i32
    %c0_i32_0 = arith.constant 0 : i32
    return %arg0, %c0_i32 : i32, i32
  }
  func.func @transform_2(%arg0: i32) -> (i32, i32) {
    %c0_i32 = arith.constant 0 : i32
    %c0_i32_0 = arith.constant 0 : i32
    return %arg0, %c0_i32 : i32, i32
  }
}

</mosaic_0001>

<llo_original>
// kernel: _lambda_.1
$region0: #{_lambda_.1}
  #allocation0 [shape = 'u32[]', space=smem, size = 0x4, offset = 0x4, fixed_abs, tag = 'smem constant byte address 0x4 - core index']
  #allocation1 [shape = 'u32[144,128]{1,0:T(1,128)}', space=vmem, size = 0x12000, scoped, tag = 'internal scratch']
  %s0 = inlined_call_operand.vmem [shape: f32[2], index: 0, kind: input, shape index: {}]
  %s1 = inlined_call_operand.vmem [shape: f32[8,256], index: 1, kind: input, shape index: {}]
  %s2 = inlined_call_operand.vmem [shape: f32[8,1], index: 2, kind: output, shape index: {}]
  %s3 = sld [smem:[#allocation0]]
  $region22: #{_lambda_.1} parent=0
    _
  %s5 = ssub.s32 1, %s3
  %s6 = scalar_select 0, %s5, %s3
  $region1: #{_lambda_.1} parent=0
    #allocation2 [shape = 'u8[512]{0}', space=smem, size = 0x200, scoped, tag = 'input window, operand 0, single buffered']
    #allocation3 [shape = 's32[1]{0}', space=sflag, size = 0x4, scoped, tag = 'scoped memory for _lambda_.1']
    %7 = vsyncpa [#allocation3], 0
    // Predicated region
    $region2: #{_lambda_.1} parent=1 // pred_check
      _
    $region3: #{_lambda_.1} parent=1 // pred_check_branch
      %9 = sbr.rel (0) target = $region5
    $region4: #{_lambda_.1} parent=1 // pred_region
      %s11 = ssub.s32 16, 16
      %12 = vsyncadd [#allocation3], %s11
      %s14 = sshll.u32 %s0, 4
      %s15 = int_to_ptr.vmem [resolvable:$true] %s14
      %17 = dma.vmem_to_smem %s15, 16, [#allocation2], [#allocation3]
    $region5: #{_lambda_.1} parent=1 // pred_fallthru
      _
    // Predicated region
    $region6: #{_lambda_.1} parent=1 // pred_check
      _
    $region7: #{_lambda_.1} parent=1 // pred_check_branch
      %19 = sbr.rel (0) target = $region9
    $region8: #{_lambda_.1} parent=1 // pred_region
      _
    $region9: #{_lambda_.1} parent=1 // pred_fallthru
      _
    // Predicated region
    $region10: #{_lambda_.1} parent=1 // pred_check
      _
    $region11: #{_lambda_.1} parent=1 // pred_check_branch
      %21 = sbr.rel (0) target = $region13
    $region12: #{_lambda_.1} parent=1 // pred_region
      %22 = dma.done [#allocation3], 16
    $region13: #{_lambda_.1} parent=1 // pred_fallthru
      _
    %23 = sfence
    %s24 = sld [smem:[#allocation2]]
    %s25 = sld [smem:[#allocation2 + $0x1]]
    %v26 = vld [vmem:[%s1] sm:$0xff]
    %v27 = vld [vmem:[%s1 + $0x8] sm:$0xff]
    %v28 = vmax.f32 %v26, 1e-06
    %v29 = vmax.f32 %v27, 1e-06
    %v30 = vlog2.pop %v28
    %v31 = vmul.f32 %v30, 0.6931472
    %v32 = vlog2.pop %v29
    %v33 = vmul.f32 %v32, 0.6931472
    %v34 = vstv %s24
    %v35 = vmul.f32 %v34, %v31
    %v36 = vmul.f32 %v34, %v33
    %v37 = vmul.f32 %v35, 1.442695
    %v38 = vpow.pop %v37
    %v39 = vmul.f32 %v36, 1.442695
    %v40 = vpow.pop %v39
    %v41 = vadd.f32 %v38, %v40
    %42 = vadd.xlane.f32.xlu0 %v41
    %v43 = vpop.xlane.xlu0 %42
    %v44 = vmul.f32 %v43, 0.00390625
    %v45 = vlog2.pop %v44
    %v46 = vmul.f32 %v45, 0.6931472
    %v47 = vstv %s25
    %v48 = vmul.f32 %v46, %v47
    %v49 = vmul.f32 %v48, 1.442695
    %v50 = vpow.pop %v49
    %vm51 = vcmask 7168
    %52 = vst.msk [vmem:[%s2] sm:$0xff] %vm51, %v50
    // Predicated region
    $region14: #{_lambda_.1} parent=1 // pred_check
      _
    $region15: #{_lambda_.1} parent=1 // pred_check_branch
      %54 = sbr.rel (0) target = $region17
    $region16: #{_lambda_.1} parent=1 // pred_region
      _
    $region17: #{_lambda_.1} parent=1 // pred_fallthru
      _
    // Predicated region
    $region18: #{_lambda_.1} parent=1 // pred_check
      _
    $region19: #{_lambda_.1} parent=1 // pred_check_branch
      %56 = sbr.rel (0) target = $region21
    $region20: #{_lambda_.1} parent=1 // pred_region
      _
    $region21: #{_lambda_.1} parent=1 // pred_fallthru
      _
    %57 = vsyncpa [#allocation3], 1

</llo_original>
